<compile_context>
chip_gen: v7x
topology: tpu7x:2x2x1
jax: 0.10.0
libtpu: 0.0.40
codegen_flags: <defaults>
</compile_context>

<pallas_src>
import functools

import jax
import jax.numpy as jnp
import numpy as np
from jax.experimental import pallas as pl
from jax.experimental.pallas import tpu as pltpu

DELTA = 0.04
_BLOCK_B = 1024  # batch rows (lanes) per grid step; multiple of 128. ~5*N*1024*4 B per buffer.


def _targets_loss_kernel(a_ref, o_ref, c_ref, g_ref, out_ref, *, delta, b_actual, block_b):
    # a_ref/o_ref: (2, N, Bb)  c_ref: (N, Bb)  g_ref: (2, Bb)  — batch on lanes, N on sublanes.
    ax = a_ref[0]            # (N, Bb) anchors x
    ay = a_ref[1]            # (N, Bb) anchors y
    ox = o_ref[0]            # (N, Bb) offsets x
    oy = o_ref[1]            # (N, Bb) offsets y
    conf = c_ref[...]        # (N, Bb)
    gtx = g_ref[0:1]         # (1, Bb) — broadcast along sublanes in-kernel (no staged bcast)
    gty = g_ref[1:2]

    n, bb = conf.shape

    # ---- closest target index (squared distance; argmin invariant under sqrt) ----
    dx = ax - gtx
    dy = ay - gty
    dist2 = dx * dx + dy * dy                                    # (N, Bb)
    dmin = jnp.min(dist2, axis=0, keepdims=True)                 # (1, Bb)
    sub_iota = jax.lax.broadcasted_iota(jnp.int32, (n, bb), 0)
    idx = jnp.min(jnp.where(dist2 == dmin, sub_iota, n), axis=0, keepdims=True)  # first-min
    onehot = (sub_iota == idx).astype(jnp.float32)               # (N, Bb)

    # ---- BCE(softmax(conf), onehot), reduction='sum', log-sum-exp form, fused reduction ----
    s = conf - jnp.max(conf, axis=0, keepdims=True)
    e = jnp.exp(s)
    S = jnp.sum(e, axis=0, keepdims=True)
    logS = jnp.log(S)
    logp = jnp.maximum(s - logS, -100.0)                          # torch-style clamp
    # clamp S - e at 0 so fp cancellation can't produce NaN; log(0)=-inf -> clamped to -100
    log1mp = jnp.maximum(jnp.log(jnp.maximum(S - e, 0.0)) - logS, -100.0)
    ce_el = -log1mp - onehot * (logp - log1mp)                    # (N, Bb)

    # ---- Huber(closest_offsets, gt - closest_anchors), reduction='sum' ----
    # Residual evaluated per element, masked by the one-hot (huber(0) == 0).
    rx = onehot * (ox - (gtx - ax))
    ry = onehot * (oy - (gty - ay))

    def huber(err):
        a = jnp.abs(err)
        return jnp.where(a <= delta, 0.5 * err * err, delta * (a - 0.5 * delta))

    hub_el = huber(rx) + huber(ry)

    # ---- per-batch (lane) partials, mask padded lanes, reduce to scalars ----
    ce_row = jnp.sum(ce_el, axis=0, keepdims=True)                # (1, Bb)
    hub_row = jnp.sum(hub_el, axis=0, keepdims=True)              # (1, Bb)
    base = pl.program_id(0) * block_b
    lane = jax.lax.broadcasted_iota(jnp.int32, (1, bb), 1)
    valid = (base + lane) < b_actual
    ce_loss = jnp.sum(jnp.where(valid, ce_row, 0.0))
    hub_loss = jnp.sum(jnp.where(valid, hub_row, 0.0))
    total = ce_loss + hub_loss

    # ---- single lane-dense (1,1,128) partial output row: [ce, huber, total, 0, ...] ----
    out_lane = jax.lax.broadcasted_iota(jnp.int32, (1, 1, 128), 2)
    out_ref[...] = jnp.where(out_lane == 0, ce_loss,
                             jnp.where(out_lane == 1, hub_loss,
                                       jnp.where(out_lane == 2, total, 0.0)))


def targets_loss(anchors, offsets, confidences, ground_truth, delta=DELTA, block_b=_BLOCK_B):
    """anchors/offsets: (B, N, 2), confidences: (B, N), ground_truth: (B, 2).
    Returns (total_loss, ce_loss, huber_loss) as f32 scalars."""
    anchors = anchors.astype(jnp.float32)
    offsets = offsets.astype(jnp.float32)
    confidences = confidences.astype(jnp.float32)
    ground_truth = ground_truth.astype(jnp.float32)
    B, N, _ = anchors.shape

    # Lane-dense layout: large batch axis -> lanes, short candidate axis N -> sublanes.
    # TODO(synk): if anchors are static across steps, hoist their transpose out of the hot path.
    a_t = jnp.transpose(anchors, (2, 1, 0))    # (2, N, B)
    o_t = jnp.transpose(offsets, (2, 1, 0))    # (2, N, B)
    c_t = confidences.T                        # (N, B)
    g_t = ground_truth.T                       # (2, B)  -- no (2,B,N) broadcast staged to HBM

    if B <= block_b:
        bb = B
        num_blocks = 1
    else:
        bb = block_b
        num_blocks = pl.cdiv(B, bb)
        b_pad = num_blocks * bb - B
        if b_pad:
            a_t = jnp.pad(a_t, ((0, 0), (0, 0), (0, b_pad)))
            o_t = jnp.pad(o_t, ((0, 0), (0, 0), (0, b_pad)))
            c_t = jnp.pad(c_t, ((0, 0), (0, b_pad)))
            g_t = jnp.pad(g_t, ((0, 0), (0, b_pad)))

    out = pl.pallas_call(
        functools.partial(_targets_loss_kernel, delta=delta, b_actual=B, block_b=bb),
        out_shape=jax.ShapeDtypeStruct((num_blocks, 1, 128), jnp.float32),
        grid_spec=pltpu.PrefetchScalarGridSpec(
            num_scalar_prefetch=0,
            grid=(num_blocks,),
            in_specs=[
                pl.BlockSpec((2, N, bb), lambda i: (0, 0, i)),
                pl.BlockSpec((2, N, bb), lambda i: (0, 0, i)),
                pl.BlockSpec((N, bb), lambda i: (0, i)),
                pl.BlockSpec((2, bb), lambda i: (0, i)),
            ],
            out_specs=pl.BlockSpec((1, 1, 128), lambda i: (i, 0, 0)),
        ),
        compiler_params=pltpu.CompilerParams(dimension_semantics=("parallel",)),
    )(a_t, o_t, c_t, g_t)

    vals = jnp.sum(out, axis=(0, 1))[:3]       # one slice: [ce, huber, total]
    return vals[2], vals[0], vals[1]


def targets_loss_ref(anchors, offsets, confidences, ground_truth, delta=DELTA):
    """Pure-JAX reference mirroring the PyTorch module."""
    anchors = anchors.astype(jnp.float32)
    offsets = offsets.astype(jnp.float32)
    confidences = confidences.astype(jnp.float32)
    ground_truth = ground_truth.astype(jnp.float32)
    gt_exp = jnp.repeat(ground_truth[:, None, :], anchors.shape[1], axis=1)
    dist = jnp.sqrt((anchors[..., 0] - gt_exp[..., 0]) ** 2 +
                    (anchors[..., 1] - gt_exp[..., 1]) ** 2)
    idx = jnp.argmin(dist, axis=-1)
    onehot = jax.nn.one_hot(idx, dist.shape[1], dtype=jnp.float32)
    p = jax.nn.softmax(confidences, axis=-1)
    logp = jnp.maximum(jnp.log(p), -100.0)
    log1mp = jnp.maximum(jnp.log(1.0 - p), -100.0)
    ce = jnp.sum(-(onehot * logp + (1.0 - onehot) * log1mp))
    closest_anchors = anchors[jnp.arange(anchors.shape[0]), idx]
    closest_offsets = offsets[jnp.arange(offsets.shape[0]), idx]
    err = closest_offsets - (ground_truth - closest_anchors)
    a = jnp.abs(err)
    hub = jnp.sum(jnp.where(a <= delta, 0.5 * err * err, delta * (a - 0.5 * delta)))
    return ce + hub, ce, hub


def _check(B, N, key):
    k1, k2, k3, k4 = jax.random.split(key, 4)
    anchors = jax.random.normal(k1, (B, N, 2), dtype=jnp.float32) * 5.0
    offsets = jax.random.normal(k2, (B, N, 2), dtype=jnp.float32) * 0.1
    confidences = jax.random.normal(k3, (B, N), dtype=jnp.float32)
    ground_truth = jax.random.normal(k4, (B, 2), dtype=jnp.float32) * 5.0

    total, ce, hub = targets_loss(anchors, offsets, confidences, ground_truth)
    jax.block_until_ready((total, ce, hub))

    total_r, ce_r, hub_r = targets_loss_ref(anchors, offsets, confidences, ground_truth)
    np.testing.assert_allclose(np.asarray(ce), np.asarray(ce_r), rtol=2e-4, atol=1e-4)
    np.testing.assert_allclose(np.asarray(hub), np.asarray(hub_r), rtol=2e-4, atol=1e-4)
    np.testing.assert_allclose(np.asarray(total), np.asarray(total_r), rtol=2e-4, atol=1e-4)


if __name__ == "__main__":
    key = jax.random.PRNGKey(0)
    k_small, k_big = jax.random.split(key)
    # Small shapes consistent with the module (single-block path).
    _check(B=4, N=16, key=k_small)
    # Larger batch exercising the lane-blocked grid + padding/mask path.
    _check(B=1500, N=16, key=k_big)
    print("KERNEL_OK")
</pallas_src>

<mosaic_0001>
module attributes {stable_mosaic.version = 11 : i64} {
  func.func @_targets_loss_kernel(%arg0: i32, %arg1: memref<2x16x4xf32, #tpu.memory_space<vmem>>, %arg2: memref<2x16x4xf32, #tpu.memory_space<vmem>>, %arg3: memref<16x4xf32, #tpu.memory_space<vmem>>, %arg4: memref<2x4xf32, #tpu.memory_space<vmem>>, %arg5: memref<1x1x128xf32, #tpu.memory_space<vmem>>) attributes {dimension_semantics = [#tpu.dimension_semantics<parallel>], iteration_bounds = array<i64: 1>, scalar_prefetch = 0 : i64, scratch_operands = 0 : i64, tpu.core_type = #tpu.core_type<tc>, window_params = [{transform_indices = @transform_0, window_bounds = array<i64: 2, 16, 4>}, {transform_indices = @transform_1, window_bounds = array<i64: 2, 16, 4>}, {transform_indices = @transform_2, window_bounds = array<i64: 16, 4>}, {transform_indices = @transform_3, window_bounds = array<i64: 2, 4>}, {transform_indices = @transform_4, window_bounds = array<i64: 1, 1, 128>}]} {
    %c0 = arith.constant 0 : index
    %c0_0 = arith.constant 0 : index
    %c0_1 = arith.constant 0 : index
    %0 = vector.load %arg1[%c0, %c0_0, %c0_1] : memref<2x16x4xf32, #tpu.memory_space<vmem>>, vector<1x16x4xf32>
    %1 = vector.shape_cast %0 : vector<1x16x4xf32> to vector<16x4xf32>
    %c1 = arith.constant 1 : index
    %c0_2 = arith.constant 0 : index
    %c0_3 = arith.constant 0 : index
    %2 = vector.load %arg1[%c1, %c0_2, %c0_3] : memref<2x16x4xf32, #tpu.memory_space<vmem>>, vector<1x16x4xf32>
    %3 = vector.shape_cast %2 : vector<1x16x4xf32> to vector<16x4xf32>
    %c0_4 = arith.constant 0 : index
    %c0_5 = arith.constant 0 : index
    %c0_6 = arith.constant 0 : index
    %4 = vector.load %arg2[%c0_4, %c0_5, %c0_6] : memref<2x16x4xf32, #tpu.memory_space<vmem>>, vector<1x16x4xf32>
    %5 = vector.shape_cast %4 : vector<1x16x4xf32> to vector<16x4xf32>
    %c1_7 = arith.constant 1 : index
    %c0_8 = arith.constant 0 : index
    %c0_9 = arith.constant 0 : index
    %6 = vector.load %arg2[%c1_7, %c0_8, %c0_9] : memref<2x16x4xf32, #tpu.memory_space<vmem>>, vector<1x16x4xf32>
    %7 = vector.shape_cast %6 : vector<1x16x4xf32> to vector<16x4xf32>
    %c0_10 = arith.constant 0 : index
    %c0_11 = arith.constant 0 : index
    %8 = vector.load %arg3[%c0_10, %c0_11] : memref<16x4xf32, #tpu.memory_space<vmem>>, vector<16x4xf32>
    %c0_12 = arith.constant 0 : index
    %c0_13 = arith.constant 0 : index
    %9 = vector.load %arg4[%c0_12, %c0_13] : memref<2x4xf32, #tpu.memory_space<vmem>>, vector<1x4xf32>
    %c1_14 = arith.constant 1 : index
    %c0_15 = arith.constant 0 : index
    %10 = vector.load %arg4[%c1_14, %c0_15] : memref<2x4xf32, #tpu.memory_space<vmem>>, vector<1x4xf32>
    %11 = vector.broadcast %9 : vector<1x4xf32> to vector<16x4xf32>
    %12 = arith.subf %1, %11 : vector<16x4xf32>
    %13 = vector.broadcast %10 : vector<1x4xf32> to vector<16x4xf32>
    %14 = arith.subf %3, %13 : vector<16x4xf32>
    %15 = arith.mulf %12, %12 : vector<16x4xf32>
    %16 = arith.mulf %14, %14 : vector<16x4xf32>
    %17 = arith.addf %15, %16 : vector<16x4xf32>
    %cst = arith.constant dense<0x7F800000> : vector<4xf32>
    %18 = vector.multi_reduction <minimumf>, %17, %cst [0] : vector<16x4xf32> to vector<4xf32>
    %19 = vector.shape_cast %18 : vector<4xf32> to vector<1x4xf32>
    %20 = tpu.iota {dimensions = array<i32: 0>} : vector<16x4xi32>
    %21 = vector.broadcast %19 : vector<1x4xf32> to vector<16x4xf32>
    %22 = arith.cmpf oeq, %17, %21 : vector<16x4xf32>
    %c16_i32 = arith.constant 16 : i32
    %23 = vector.broadcast %c16_i32 : i32 to vector<16x4xi32>
    %24 = arith.select %22, %20, %23 : vector<16x4xi1>, vector<16x4xi32>
    %cst_16 = arith.constant dense<2147483647> : vector<4xi32>
    %25 = vector.multi_reduction <minsi>, %24, %cst_16 [0] : vector<16x4xi32> to vector<4xi32>
    %26 = vector.shape_cast %25 : vector<4xi32> to vector<1x4xi32>
    %27 = vector.broadcast %26 : vector<1x4xi32> to vector<16x4xi32>
    %28 = arith.cmpi eq, %20, %27 : vector<16x4xi32>
    %29 = arith.extui %28 : vector<16x4xi1> to vector<16x4xi32>
    %30 = arith.sitofp %29 : vector<16x4xi32> to vector<16x4xf32>
    %cst_17 = arith.constant dense<0xFF800000> : vector<4xf32>
    %31 = vector.multi_reduction <maximumf>, %8, %cst_17 [0] : vector<16x4xf32> to vector<4xf32>
    %32 = vector.shape_cast %31 : vector<4xf32> to vector<1x4xf32>
    %33 = vector.broadcast %32 : vector<1x4xf32> to vector<16x4xf32>
    %34 = arith.subf %8, %33 : vector<16x4xf32>
    %35 = math.exp %34 : vector<16x4xf32>
    %cst_18 = arith.constant dense<0.000000e+00> : vector<4xf32>
    %36 = vector.multi_reduction <add>, %35, %cst_18 [0] : vector<16x4xf32> to vector<4xf32>
    %37 = vector.shape_cast %36 : vector<4xf32> to vector<1x4xf32>
    %38 = math.log %37 : vector<1x4xf32>
    %39 = vector.broadcast %38 : vector<1x4xf32> to vector<16x4xf32>
    %40 = arith.subf %34, %39 : vector<16x4xf32>
    %cst_19 = arith.constant -1.000000e+02 : f32
    %41 = vector.broadcast %cst_19 : f32 to vector<16x4xf32>
    %42 = arith.maximumf %40, %41 : vector<16x4xf32>
    %43 = vector.broadcast %37 : vector<1x4xf32> to vector<16x4xf32>
    %44 = arith.subf %43, %35 : vector<16x4xf32>
    %cst_20 = arith.constant 0.000000e+00 : f32
    %45 = vector.broadcast %cst_20 : f32 to vector<16x4xf32>
    %46 = arith.maximumf %44, %45 : vector<16x4xf32>
    %47 = math.log %46 : vector<16x4xf32>
    %48 = vector.broadcast %38 : vector<1x4xf32> to vector<16x4xf32>
    %49 = arith.subf %47, %48 : vector<16x4xf32>
    %cst_21 = arith.constant -1.000000e+02 : f32
    %50 = vector.broadcast %cst_21 : f32 to vector<16x4xf32>
    %51 = arith.maximumf %49, %50 : vector<16x4xf32>
    %cst_22 = arith.constant 0.000000e+00 : f32
    %52 = vector.broadcast %cst_22 : f32 to vector<16x4xf32>
    %53 = arith.subf %52, %51 : vector<16x4xf32>
    %54 = arith.subf %42, %51 : vector<16x4xf32>
    %55 = arith.mulf %30, %54 : vector<16x4xf32>
    %56 = arith.subf %53, %55 : vector<16x4xf32>
    %57 = vector.broadcast %9 : vector<1x4xf32> to vector<16x4xf32>
    %58 = arith.subf %57, %1 : vector<16x4xf32>
    %59 = arith.subf %5, %58 : vector<16x4xf32>
    %60 = arith.mulf %30, %59 : vector<16x4xf32>
    %61 = vector.broadcast %10 : vector<1x4xf32> to vector<16x4xf32>
    %62 = arith.subf %61, %3 : vector<16x4xf32>
    %63 = arith.subf %7, %62 : vector<16x4xf32>
    %64 = arith.mulf %30, %63 : vector<16x4xf32>
    %65 = math.absf %60 : vector<16x4xf32>
    %cst_23 = arith.constant 4.000000e-02 : f32
    %66 = vector.broadcast %cst_23 : f32 to vector<16x4xf32>
    %67 = arith.cmpf ole, %65, %66 : vector<16x4xf32>
    %cst_24 = arith.constant 5.000000e-01 : f32
    %68 = vector.broadcast %cst_24 : f32 to vector<16x4xf32>
    %69 = arith.mulf %68, %60 : vector<16x4xf32>
    %70 = arith.mulf %69, %60 : vector<16x4xf32>
    %cst_25 = arith.constant 2.000000e-02 : f32
    %71 = vector.broadcast %cst_25 : f32 to vector<16x4xf32>
    %72 = arith.subf %65, %71 : vector<16x4xf32>
    %cst_26 = arith.constant 4.000000e-02 : f32
    %73 = vector.broadcast %cst_26 : f32 to vector<16x4xf32>
    %74 = arith.mulf %73, %72 : vector<16x4xf32>
    %75 = arith.select %67, %70, %74 : vector<16x4xi1>, vector<16x4xf32>
    %76 = math.absf %64 : vector<16x4xf32>
    %cst_27 = arith.constant 4.000000e-02 : f32
    %77 = vector.broadcast %cst_27 : f32 to vector<16x4xf32>
    %78 = arith.cmpf ole, %76, %77 : vector<16x4xf32>
    %cst_28 = arith.constant 5.000000e-01 : f32
    %79 = vector.broadcast %cst_28 : f32 to vector<16x4xf32>
    %80 = arith.mulf %79, %64 : vector<16x4xf32>
    %81 = arith.mulf %80, %64 : vector<16x4xf32>
    %cst_29 = arith.constant 2.000000e-02 : f32
    %82 = vector.broadcast %cst_29 : f32 to vector<16x4xf32>
    %83 = arith.subf %76, %82 : vector<16x4xf32>
    %cst_30 = arith.constant 4.000000e-02 : f32
    %84 = vector.broadcast %cst_30 : f32 to vector<16x4xf32>
    %85 = arith.mulf %84, %83 : vector<16x4xf32>
    %86 = arith.select %78, %81, %85 : vector<16x4xi1>, vector<16x4xf32>
    %87 = arith.addf %75, %86 : vector<16x4xf32>
    %cst_31 = arith.constant dense<0.000000e+00> : vector<4xf32>
    %88 = vector.multi_reduction <add>, %56, %cst_31 [0] : vector<16x4xf32> to vector<4xf32>
    %89 = vector.shape_cast %88 : vector<4xf32> to vector<1x4xf32>
    %cst_32 = arith.constant dense<0.000000e+00> : vector<4xf32>
    %90 = vector.multi_reduction <add>, %87, %cst_32 [0] : vector<16x4xf32> to vector<4xf32>
    %91 = vector.shape_cast %90 : vector<4xf32> to vector<1x4xf32>
    %c4_i32 = arith.constant 4 : i32
    %92 = arith.muli %arg0, %c4_i32 : i32
    %93 = tpu.iota {dimensions = array<i32: 1>} : vector<1x4xi32>
    %94 = vector.broadcast %92 : i32 to vector<1x4xi32>
    %95 = arith.addi %94, %93 : vector<1x4xi32>
    %c4_i32_33 = arith.constant 4 : i32
    %96 = vector.broadcast %c4_i32_33 : i32 to vector<1x4xi32>
    %97 = arith.cmpi slt, %95, %96 : vector<1x4xi32>
    %cst_34 = arith.constant 0.000000e+00 : f32
    %98 = vector.broadcast %cst_34 : f32 to vector<1x4xf32>
    %99 = arith.select %97, %89, %98 : vector<1x4xi1>, vector<1x4xf32>
    %100 = vector.shape_cast %99 : vector<1x4xf32> to vector<1x1x4xf32>
    %cst_35 = arith.constant dense<0.000000e+00> : vector<1xf32>
    %101 = vector.multi_reduction <add>, %100, %cst_35 [1, 2] : vector<1x1x4xf32> to vector<1xf32>
    %102 = vector.shape_cast %101 : vector<1xf32> to vector<1x1x1xf32>
    %103 = vector.extract %102[0, 0, 0] : f32 from vector<1x1x1xf32>
    %cst_36 = arith.constant 0.000000e+00 : f32
    %104 = vector.broadcast %cst_36 : f32 to vector<1x4xf32>
    %105 = arith.select %97, %91, %104 : vector<1x4xi1>, vector<1x4xf32>
    %106 = vector.shape_cast %105 : vector<1x4xf32> to vector<1x1x4xf32>
    %cst_37 = arith.constant dense<0.000000e+00> : vector<1xf32>
    %107 = vector.multi_reduction <add>, %106, %cst_37 [1, 2] : vector<1x1x4xf32> to vector<1xf32>
    %108 = vector.shape_cast %107 : vector<1xf32> to vector<1x1x1xf32>
    %109 = vector.extract %108[0, 0, 0] : f32 from vector<1x1x1xf32>
    %110 = arith.addf %103, %109 : f32
    %111 = tpu.iota {dimensions = array<i32: 2>} : vector<1x1x128xi32>
    %c0_i32 = arith.constant 0 : i32
    %112 = vector.broadcast %c0_i32 : i32 to vector<1x1x128xi32>
    %113 = arith.cmpi eq, %111, %112 : vector<1x1x128xi32>
    %c1_i32 = arith.constant 1 : i32
    %114 = vector.broadcast %c1_i32 : i32 to vector<1x1x128xi32>
    %115 = arith.cmpi eq, %111, %114 : vector<1x1x128xi32>
    %c2_i32 = arith.constant 2 : i32
    %116 = vector.broadcast %c2_i32 : i32 to vector<1x1x128xi32>
    %117 = arith.cmpi eq, %111, %116 : vector<1x1x128xi32>
    %cst_38 = arith.constant 0.000000e+00 : f32
    %118 = vector.broadcast %110 : f32 to vector<1x1x128xf32>
    %119 = vector.broadcast %cst_38 : f32 to vector<1x1x128xf32>
    %120 = arith.select %117, %118, %119 : vector<1x1x128xi1>, vector<1x1x128xf32>
    %121 = vector.broadcast %109 : f32 to vector<1x1x128xf32>
    %122 = arith.select %115, %121, %120 : vector<1x1x128xi1>, vector<1x1x128xf32>
    %123 = vector.broadcast %103 : f32 to vector<1x1x128xf32>
    %124 = arith.select %113, %123, %122 : vector<1x1x128xi1>, vector<1x1x128xf32>
    %c0_39 = arith.constant 0 : index
    %c0_40 = arith.constant 0 : index
    %c0_41 = arith.constant 0 : index
    %125 = vector.load %arg5[%c0_39, %c0_40, %c0_41] : memref<1x1x128xf32, #tpu.memory_space<vmem>>, vector<1x1x128xf32>
    tpu.vector_store %arg5[%c0_39, %c0_40, %c0_41], %124 {strides = array<i32>} : memref<1x1x128xf32, #tpu.memory_space<vmem>>, vector<1x1x128xf32>,
    return
  }
  func.func @transform_0(%arg0: i32) -> (i32, i32, i32) {
    %c0_i32 = arith.constant 0 : i32
    %c0_i32_0 = arith.constant 0 : i32
    %c0_i32_1 = arith.constant 0 : i32
    return %c0_i32, %c0_i32_0, %arg0 : i32, i32, i32
  }
  func.func @transform_1(%arg0: i32) -> (i32, i32, i32) {
    %c0_i32 = arith.constant 0 : i32
    %c0_i32_0 = arith.constant 0 : i32
    %c0_i32_1 = arith.constant 0 : i32
    return %c0_i32, %c0_i32_0, %arg0 : i32, i32, i32
  }
  func.func @transform_2(%arg0: i32) -> (i32, i32) {
    %c0_i32 = arith.constant 0 : i32
    %c0_i32_0 = arith.constant 0 : i32
    return %c0_i32, %arg0 : i32, i32
  }
  func.func @transform_3(%arg0: i32) -> (i32, i32) {
    %c0_i32 = arith.constant 0 : i32
    %c0_i32_0 = arith.constant 0 : i32
    return %c0_i32, %arg0 : i32, i32
  }
  func.func @transform_4(%arg0: i32) -> (i32, i32, i32) {
    %c0_i32 = arith.constant 0 : i32
    %c0_i32_0 = arith.constant 0 : i32
    %c0_i32_1 = arith.constant 0 : i32
    return %arg0, %c0_i32, %c0_i32_0 : i32, i32, i32
  }
}

</mosaic_0001>

<llo_original>
// kernel: tpu_custom_call.1
$region0: #{tpu_custom_call.1}
  #allocation0 [shape = 'u32[]', space=smem, size = 0x4, offset = 0x4, fixed_abs, tag = 'smem constant byte address 0x4 - core index']
  #allocation1 [shape = 'u32[144,128]{1,0:T(1,128)}', space=vmem, size = 0x12000, scoped, tag = 'internal scratch']
  %s0 = inlined_call_operand.vmem [shape: f32[2,16,4], index: 0, kind: input, shape index: {}]
  %s1 = inlined_call_operand.vmem [shape: f32[2,16,4], index: 1, kind: input, shape index: {}]
  %s2 = inlined_call_operand.vmem [shape: f32[16,4], index: 2, kind: input, shape index: {}]
  %s3 = inlined_call_operand.vmem [shape: f32[2,4], index: 3, kind: input, shape index: {}]
  %s4 = inlined_call_operand.hbm [shape: f32[1,1,128], index: 4, kind: output, shape index: {}]
  %s5 = sld [smem:[#allocation0]]
  $region26: #{tpu_custom_call.1} parent=0
    _
  %s7 = ssub.s32 1, %s5
  %s8 = scalar_select 0, %s7, %s5
  $region1: #{tpu_custom_call.1} parent=0
    #allocation2 [shape = 'u8[512]{0}', space=vmem, size = 0x400, scoped, tag = 'output window, operand 0, single buffered']
    #allocation3 [shape = 's32[1]{0}', space=sflag, size = 0x4, scoped, tag = 'scoped memory for tpu_custom_call.1']
    %9 = vsyncpa [#allocation3], 0
    // Predicated region
    $region2: #{tpu_custom_call.1} parent=1 // pred_check
      _
    $region3: #{tpu_custom_call.1} parent=1 // pred_check_branch
      %11 = sbr.rel (0) target = $region5
    $region4: #{tpu_custom_call.1} parent=1 // pred_region
      _
    $region5: #{tpu_custom_call.1} parent=1 // pred_fallthru
      _
    // Predicated region
    $region6: #{tpu_custom_call.1} parent=1 // pred_check
      _
    $region7: #{tpu_custom_call.1} parent=1 // pred_check_branch
      %13 = sbr.rel (0) target = $region9
    $region8: #{tpu_custom_call.1} parent=1 // pred_region
      _
    $region9: #{tpu_custom_call.1} parent=1 // pred_fallthru
      _
    // Predicated region
    $region10: #{tpu_custom_call.1} parent=1 // pred_check
      _
    $region11: #{tpu_custom_call.1} parent=1 // pred_check_branch
      %15 = sbr.rel (0) target = $region13
    $region12: #{tpu_custom_call.1} parent=1 // pred_region
      _
    $region13: #{tpu_custom_call.1} parent=1 // pred_fallthru
      _
    // Predicated region
    $region14: #{tpu_custom_call.1} parent=1 // pred_check
      _
    $region15: #{tpu_custom_call.1} parent=1 // pred_check_branch
      %17 = sbr.rel (0) target = $region17
    $region16: #{tpu_custom_call.1} parent=1 // pred_region
      _
    $region17: #{tpu_custom_call.1} parent=1 // pred_fallthru
      _
    %v18 = vld [vmem:[%s0] sm:$0xff]
    %v19 = vld [vmem:[%s0 + $0x8] sm:$0xff]
    %s20 = scalar_lea.vmem %s0, 16
    %v21 = vld [vmem:[%s20] sm:$0xff]
    %v22 = vld [vmem:[%s20 + $0x8] sm:$0xff]
    %v23 = vld [vmem:[%s1] sm:$0xff]
    %v24 = vld [vmem:[%s1 + $0x8] sm:$0xff]
    %s25 = scalar_lea.vmem %s1, 16
    %v26 = vld [vmem:[%s25] sm:$0xff]
    %v27 = vld [vmem:[%s25 + $0x8] sm:$0xff]
    %v28 = vld [vmem:[%s2] sm:$0xff]
    %v29 = vld [vmem:[%s2 + $0x8] sm:$0xff]
    %v30 = vld [vmem:[%s3] sm:$0x1]
    %v31 = vld [vmem:[%s3 + $0x1] sm:$0x1]
    %v32 = vlaneseq
    %v33 = vshrl.u32 %v32, 7
    %v34 = vsub.s32 0, %v33
    %v35 = vrot.slane %v30, %v34
    %v36 = vsub.f32 %v18, %v35
    %v37 = vsub.f32 %v19, %v35
    %v38 = vlaneseq
    %v39 = vshrl.u32 %v38, 7
    %v40 = vsub.s32 0, %v39
    %v41 = vrot.slane %v31, %v40
    %v42 = vsub.f32 %v21, %v41
    %v43 = vsub.f32 %v22, %v41
    %v44 = vmul.f32 %v36, %v36
    %v45 = vmul.f32 %v37, %v37
    %v46 = vmul.f32 %v42, %v42
    %v47 = vmul.f32 %v43, %v43
    %v48 = vadd.f32 %v44, %v46
    %v49 = vadd.f32 %v45, %v47
    %vm50 = vcmask 31744
    %v51 = vsel %vm50, %v48, inf
    %v52 = vsel %vm50, %v49, inf
    %v53 = vmin.f32 %v51, %v52
    %v54 = vrot.slane %v53, 4
    %v55 = vmin.f32 %v53, %v54
    %v56 = vrot.slane %v55, 2
    %v57 = vmin.f32 %v55, %v56
    %v58 = vrot.slane %v57, 1
    %v59 = vmin.f32 %v57, %v58
    %v60 = vlaneseq
    %v61 = vshrl.u32 %v60, 7
    %v62 = vadd.s32 %v61, 8
    %vm63 = vcmp.eq.f32.partialorder %v48, %v59
    %vm64 = vcmp.eq.f32.partialorder %v49, %v59
    %v65 = vsel %vm63, %v61, 16
    %v66 = vsel %vm64, %v62, 16
    %v67 = vsel %vm50, %v65, 2147483647
    %v68 = vsel %vm50, %v66, 2147483647
    %vm69 = vcmp.lt.s32.totalorder %v67, %v68
    %v70 = vsel %vm69, %v67, %v68
    %v71 = vrot.slane %v70, 4
    %vm72 = vcmp.lt.s32.totalorder %v70, %v71
    %v73 = vsel %vm72, %v70, %v71
    %v74 = vrot.slane %v73, 2
    %vm75 = vcmp.lt.s32.totalorder %v73, %v74
    %v76 = vsel %vm75, %v73, %v74
    %v77 = vrot.slane %v76, 1
    %vm78 = vcmp.lt.s32.totalorder %v76, %v77
    %v79 = vsel %vm78, %v76, %v77
    %vm80 = vcmp.eq.s32.totalorder %v61, %v79
    %vm81 = vcmp.eq.s32.totalorder %v62, %v79
    %v82 = vsel %vm80, 1, 0
    %v83 = vsel %vm81, 1, 0
    %v84 = vcvt.s32.f32 %v82
    %v85 = vcvt.s32.f32 %v83
    %v86 = vsel %vm50, %v28, -inf
    %v87 = vsel %vm50, %v29, -inf
    %v88 = vmax.f32 %v86, %v87
    %v89 = vrot.slane %v88, 4
    %v90 = vmax.f32 %v88, %v89
    %v91 = vrot.slane %v90, 2
    %v92 = vmax.f32 %v90, %v91
    %v93 = vrot.slane %v92, 1
    %v94 = vmax.f32 %v92, %v93
    %v95 = vsub.f32 %v28, %v94
    %v96 = vsub.f32 %v29, %v94
    %v97 = vmul.f32 %v95, 1.442695
    %v98 = vpow.pop %v97
    %v99 = vmul.f32 %v96, 1.442695
    %v100 = vpow.pop %v99
    %v101 = vsel %vm50, %v98, 0.0
    %v102 = vsel %vm50, %v100, 0.0
    %v103 = vadd.f32 %v101, %v102
    %v104 = vrot.slane %v103, 4
    %v105 = vadd.f32 %v103, %v104
    %v106 = vrot.slane %v105, 2
    %v107 = vadd.f32 %v105, %v106
    %v108 = vrot.slane %v107, 1
    %v109 = vadd.f32 %v107, %v108
    %v110 = vlog2.pop %v109
    %v111 = vmul.f32 %v110, 0.6931472
    %v112 = vsub.f32 %v95, %v111
    %v113 = vsub.f32 %v96, %v111
    %v114 = vmax.f32 %v112, -100.0
    %v115 = vmax.f32 %v113, -100.0
    %v116 = vsub.f32 %v109, %v98
    %v117 = vsub.f32 %v109, %v100
    %v118 = vmax.f32 %v116, 0.0
    %v119 = vmax.f32 %v117, 0.0
    %v120 = vlog2.pop %v118
    %v121 = vmul.f32 %v120, 0.6931472
    %v122 = vlog2.pop %v119
    %v123 = vmul.f32 %v122, 0.6931472
    %v124 = vsub.f32 %v121, %v111
    %v125 = vsub.f32 %v123, %v111
    %v126 = vmax.f32 %v124, -100.0
    %v127 = vmax.f32 %v125, -100.0
    %v128 = vsub.f32 0.0, %v126
    %v129 = vsub.f32 0.0, %v127
    %v130 = vsub.f32 %v114, %v126
    %v131 = vsub.f32 %v115, %v127
    %v132 = vmul.f32 %v84, %v130
    %v133 = vmul.f32 %v85, %v131
    %v134 = vsub.f32 %v128, %v132
    %v135 = vsub.f32 %v129, %v133
    %v136 = vsub.f32 %v35, %v18
    %v137 = vsub.f32 %v35, %v19
    %v138 = vsub.f32 %v23, %v136
    %v139 = vsub.f32 %v24, %v137
    %v140 = vmul.f32 %v84, %v138
    %v141 = vmul.f32 %v85, %v139
    %v142 = vsub.f32 %v41, %v21
    %v143 = vsub.f32 %v41, %v22
    %v144 = vsub.f32 %v26, %v142
    %v145 = vsub.f32 %v27, %v143
    %v146 = vmul.f32 %v84, %v144
    %v147 = vmul.f32 %v85, %v145
    %v148 = vand.u32 2147483647, %v140
    %v149 = vand.u32 2147483647, %v141
    %vm150 = vcmp.le.f32.partialorder %v148, 0.04
    %vm151 = vcmp.le.f32.partialorder %v149, 0.04
    %v152 = vmul.f32 %v140, 0.5
    %v153 = vmul.f32 %v141, 0.5
    %v154 = vmul.f32 %v152, %v140
    %v155 = vmul.f32 %v153, %v141
    %v156 = vsub.f32 %v148, 0.02
    %v157 = vsub.f32 %v149, 0.02
    %v158 = vmul.f32 %v156, 0.04
    %v159 = vmul.f32 %v157, 0.04
    %v160 = vsel %vm150, %v154, %v158
    %v161 = vsel %vm151, %v155, %v159
    %v162 = vand.u32 2147483647, %v146
    %v163 = vand.u32 2147483647, %v147
    %vm164 = vcmp.le.f32.partialorder %v162, 0.04
    %vm165 = vcmp.le.f32.partialorder %v163, 0.04
    %v166 = vmul.f32 %v146, 0.5
    %v167 = vmul.f32 %v147, 0.5
    %v168 = vmul.f32 %v166, %v146
    %v169 = vmul.f32 %v167, %v147
    %v170 = vsub.f32 %v162, 0.02
    %v171 = vsub.f32 %v163, 0.02
    %v172 = vmul.f32 %v170, 0.04
    %v173 = vmul.f32 %v171, 0.04
    %v174 = vsel %vm164, %v168, %v172
    %v175 = vsel %vm165, %v169, %v173
    %v176 = vadd.f32 %v160, %v174
    %v177 = vadd.f32 %v161, %v175
    %v178 = vsel %vm50, %v134, 0.0
    %v179 = vsel %vm50, %v135, 0.0
    %v180 = vadd.f32 %v178, %v179
    %v181 = vrot.slane %v180, 4
    %v182 = vadd.f32 %v180, %v181
    %v183 = vrot.slane %v182, 2
    %v184 = vadd.f32 %v182, %v183
    %v185 = vrot.slane %v184, 1
    %v186 = vadd.f32 %v184, %v185
    %v187 = vsel %vm50, %v176, 0.0
    %v188 = vsel %vm50, %v177, 0.0
    %v189 = vadd.f32 %v187, %v188
    %v190 = vrot.slane %v189, 4
    %v191 = vadd.f32 %v189, %v190
    %v192 = vrot.slane %v191, 2
    %v193 = vadd.f32 %v191, %v192
    %v194 = vrot.slane %v193, 1
    %v195 = vadd.f32 %v193, %v194
    %s196 = smul.u32 0, 4
    %v197 = vlaneseq
    %v198 = vand.u32 %v197, 127
    %v199 = vstv %s196
    %v200 = vadd.s32 %v199, %v198
    %vm201 = vcmp.lt.s32.totalorder %v200, 4
    %v202 = vsel %vm201, %v186, 0.0
    %vm203 = vcmask 24576
    %v204 = vsel %vm203, %v202, 0.0
    %205 = vadd.xlane.f32.xlu0 %v204
    %v206 = vpop.xlane.xlu0 %205
    %v207 = vrot.slane %v206, 4
    %v208 = vadd.f32 %v206, %v207
    %v209 = vrot.slane %v208, 2
    %v210 = vadd.f32 %v208, %v209
    %v211 = vrot.slane %v210, 1
    %v212 = vadd.f32 %v210, %v211
    %s213 = vtos %v212
    %v214 = vsel %vm201, %v195, 0.0
    %v215 = vsel %vm203, %v214, 0.0
    %216 = vadd.xlane.f32.xlu0 %v215
    %v217 = vpop.xlane.xlu0 %216
    %v218 = vrot.slane %v217, 4
    %v219 = vadd.f32 %v217, %v218
    %v220 = vrot.slane %v219, 2
    %v221 = vadd.f32 %v219, %v220
    %v222 = vrot.slane %v221, 1
    %v223 = vadd.f32 %v221, %v222
    %s224 = vtos %v223
    %s225 = sadd.f32 %s213, %s224
    %vm226 = vcmp.eq.s32.totalorder %v198, 0
    %vm227 = vcmp.eq.s32.totalorder %v198, 1
    %vm228 = vcmp.eq.s32.totalorder %v198, 2
    %v229 = vstv %s225
    %v230 = vsel %vm228, %v229, 0.0
    %v231 = vstv %s224
    %v232 = vsel %vm227, %v231, %v230
    %v233 = vstv %s213
    %v234 = vsel %vm226, %v233, %v232
    %235 = vst [vmem:[#allocation2] sm:$0x1] %v234
    // Predicated region
    $region18: #{tpu_custom_call.1} parent=1 // pred_check
      _
    $region19: #{tpu_custom_call.1} parent=1 // pred_check_branch
      %237 = sbr.rel (0) target = $region21
    $region20: #{tpu_custom_call.1} parent=1 // pred_region
      %s239 = ssub.s32 16, 16
      %240 = vsyncadd [#allocation3], %s239
      %s242 = sshll.u32 [#allocation2], 4
      %s243 = int_to_ptr.vmem [resolvable:$true] %s242
      %245 = dma.vmem_to_hbm [thread:$0]  %s243, 16, %s4, [#allocation3]
    $region21: #{tpu_custom_call.1} parent=1 // pred_fallthru
      _
    // Predicated region
    $region22: #{tpu_custom_call.1} parent=1 // pred_check
      _
    $region23: #{tpu_custom_call.1} parent=1 // pred_check_branch
      %247 = sbr.rel (0) target = $region25
    $region24: #{tpu_custom_call.1} parent=1 // pred_region
      %248 = dma.done [#allocation3], 16
    $region25: #{tpu_custom_call.1} parent=1 // pred_fallthru
      _
    %249 = vsyncpa [#allocation3], 1

</llo_original>
